<compile_context>
chip_gen: v7x
topology: tpu7x:2x2x1
jax: 0.10.0
libtpu: 0.0.40
codegen_flags: <defaults>
</compile_context>

<pallas_src>
import functools
import math

import jax
import jax.numpy as jnp
from jax import lax
from jax.experimental import pallas as pl
from jax.experimental.pallas import tpu as pltpu


def _round_up(x, m):
    return ((x + m - 1) // m) * m


def _device_kind():
    try:
        return jax.devices()[0].device_kind.lower()
    except Exception:
        return ""


def _vmem_cap_bytes():
    # Physical VMEM per TensorCore with ~15% headroom for compiler scratch /
    # pipelining (v5e/v6e: 128 MiB, v7x: 64 MiB).  Falls back conservatively.
    try:
        cap = int(pltpu.get_tpu_info().vmem_capacity_bytes)
    except Exception:
        cap = 64 << 20
    return int(cap * 0.85)


# ---------------------------------------------------------------------------
# Path 1: small vocab — fused one-hot @ block-diagonal table on the MXU
# ---------------------------------------------------------------------------
def _onehot_kernel(ids_ref, tab_ref, out_ref, *, scale, pack_k, vp):
    # ids_ref: (TR, pack_k) int32 — pack_k consecutive tokens per output row.
    # tab_ref: (pack_k*Vp, pack_k*D) block-diagonal table: rows [j*Vp,(j+1)*Vp)
    #          hold the vocab-padded table shifted into lane seg [j*D,(j+1)*D).
    # out_ref: (TR, pack_k*D) lane-dense scaled embeddings.
    ids = ids_ref[...]
    tr = ids.shape[0]
    iota_v = lax.broadcasted_iota(jnp.int32, (tr, vp), 1)
    parts = []
    for j in range(pack_k):
        idj = lax.slice_in_dim(ids, j, j + 1, axis=1)          # (TR, 1)
        parts.append((idj == iota_v).astype(tab_ref.dtype))    # (TR, Vp)
    # Fuse the pack_k slot matmuls: one lane-concatenated one-hot, one MXU call
    # (no per-slot result-FIFO drain, no (pack_k-1) f32 tile adds).
    onehot = parts[0] if pack_k == 1 else jnp.concatenate(parts, axis=1)
    acc = jnp.dot(onehot, tab_ref[...], preferred_element_type=jnp.float32)
    # TODO(synk): optional bf16 fast path for f32 tables on v6e/v7x (hi/lo
    # split) not enabled — current f32 formulation is kept exact.
    out_ref[...] = (acc * scale).astype(out_ref.dtype)


def _prepare_onehot_table(table, *, max_table_vmem_bytes=8 << 20):
    """Vocab-pad + lane-pack the table for the one-hot matmul path.

    Returns (table_blkdiag, vp, pack_k).  Depends only on the table — compute
    once per table (module init / closure) and pass via `prepared=`; rebuilding
    it every forward costs an extra un-hidden O(pack_k^2*Vp*D) HBM round trip.
    """
    v, d = table.shape
    itemsize = jnp.dtype(table.dtype).itemsize
    kind = _device_kind()
    # MXU K-dim alignment: 128 on v5e (128x128 MXU) or for tiny vocabs; 256 on
    # v6e/v7x (256-wide systolic tile) only when the vocab actually needs it.
    align = 128 if ("v5" in kind or v <= 128) else 256
    vp = _round_up(v, align)

    # Lane-dense packing factor: pack_k tokens per 128-lane output row.
    pack_k = 1
    if d < 128 and 128 % d == 0:
        pack_k = 128 // d
        while pack_k > 1 and pack_k * pack_k * vp * d * itemsize > max_table_vmem_bytes:
            pack_k //= 2

    table_p = table if vp == v else jnp.pad(table, ((0, vp - v), (0, 0)))
    if pack_k == 1:
        return table_p, vp, pack_k
    blocks = [jnp.pad(table_p, ((0, 0), (j * d, (pack_k - 1 - j) * d)))
              for j in range(pack_k)]
    return jnp.concatenate(blocks, axis=0), vp, pack_k   # (pack_k*Vp, pack_k*D)


def _onehot_embed(ids_flat, table, scale, block_tokens, prepared=None):
    n = ids_flat.shape[0]
    v, d = table.shape
    itemsize = jnp.dtype(table.dtype).itemsize

    if prepared is None:
        prepared = _prepare_onehot_table(table)
    table_blk, vp, pack_k = prepared
    kp, dp = pack_k * vp, pack_k * d

    # Pack pack_k consecutive tokens per output row (pad ids if N % pack_k).
    n1 = _round_up(n, pack_k)
    if n1 != n:
        ids_flat = jnp.pad(ids_flat, (0, n1 - n))   # padded ids -> row 0 (dropped)
    rows = n1 // pack_k
    ids2d = ids_flat.reshape(rows, pack_k)

    # Token tile: large (amortize the ~600-cycle grid-step overhead), bounded
    # by the one-hot temporary's VMEM footprint, and capped so the grid has
    # >=2 steps when there is enough work (v7x megacore sharding).
    if block_tokens is None:
        block_tokens = 2048 if kp <= 1024 else 512
    block_rows = max(8, (block_tokens // pack_k) // 8 * 8)
    max_rows_onehot = max(8, ((8 << 20) // (kp * 4)) // 8 * 8)
    block_rows = min(block_rows, max_rows_onehot)
    if rows >= 16:
        block_rows = min(block_rows, max(8, _round_up((rows + 1) // 2, 8)))
    block_rows = min(block_rows, rows)

    grid_n = pl.cdiv(rows, block_rows)
    rows_pad = grid_n * block_rows
    if rows_pad != rows:
        ids2d = jnp.pad(ids2d, ((0, rows_pad - rows), (0, 0)))

    # Constant index_map -> single-buffer the resident table unconditionally
    # (it is never re-fetched; a second buffer is pure VMEM waste).
    tab_spec = pl.BlockSpec((kp, dp), lambda i: (0, 0),
                            pipeline_mode=pl.Buffered(1))

    tab_bytes = kp * dp * itemsize
    est = (tab_bytes
           + 2 * block_rows * (pack_k * 4 + dp * itemsize)   # ids + out tiles (dbl-buf)
           + block_rows * kp * itemsize                       # one-hot temporary
           + block_rows * dp * 4                              # f32 accumulator
           + (2 << 20))
    vmem_limit = None if est <= (32 << 20) else int(min(est, _vmem_cap_bytes()))

    out = pl.pallas_call(
        functools.partial(_onehot_kernel, scale=scale, pack_k=pack_k, vp=vp),
        out_shape=jax.ShapeDtypeStruct((rows_pad, dp), table.dtype),
        grid=(grid_n,),
        in_specs=[
            pl.BlockSpec((block_rows, pack_k), lambda i: (i, 0)),
            tab_spec,
        ],
        out_specs=pl.BlockSpec((block_rows, dp), lambda i: (i, 0)),
        compiler_params=pltpu.CompilerParams(
            dimension_semantics=("parallel",),
            vmem_limit_bytes=vmem_limit),
    )(ids2d, table_blk)

    out_flat = out.reshape(rows_pad * pack_k, d)
    if rows_pad * pack_k != n:
        out_flat = out_flat[:n]
    return out_flat


# ---------------------------------------------------------------------------
# Path 2: large vocab — batched manual-DMA row gather (table stays in HBM)
# ---------------------------------------------------------------------------
def _gather_kernel(ids_smem, tab_hbm, out_ref, buf, sems, *, rows, scale, num_rows):
    # ids_smem: (chunk,) int32 token ids in SMEM (scalar-prefetched).
    # tab_hbm:  (V, D) embedding table left in HBM (memory_space=pl.ANY).
    # out_ref:  (rows, D) VMEM output tile.
    # buf:      (rows, D) VMEM gather scratch;  sems: (rows,) DMA semaphores.
    base = pl.program_id(0) * rows
    # Issue all row gathers first so `rows` DMAs are in flight concurrently
    # (hides HBM latency), then wait and do one sublane-dense tile store.
    for r in range(rows):
        tok = ids_smem[base + r]
        tok = jnp.clip(tok, 0, num_rows - 1)   # keep tail-pad / OOB ids in range
        pltpu.make_async_copy(tab_hbm.at[pl.ds(tok, 1), :],
                              buf.at[pl.ds(r, 1), :],
                              sems.at[r]).start()
    for r in range(rows):
        pltpu.make_async_copy(tab_hbm.at[pl.ds(0, 1), :],
                              buf.at[pl.ds(r, 1), :],
                              sems.at[r]).wait()
    out_ref[...] = (buf[...].astype(jnp.float32) * scale).astype(out_ref.dtype)


def _gather_embed(ids_flat, table, scale, *, rows_per_step=8,
                  max_tokens_per_call=32768):
    n = ids_flat.shape[0]
    v, d = table.shape

    def one_chunk(ids_chunk):
        m = ids_chunk.shape[0]
        m_pad = _round_up(m, rows_per_step)
        if m_pad != m:
            ids_chunk = jnp.pad(ids_chunk, (0, m_pad - m))
        grid_n = m_pad // rows_per_step
        out = pl.pallas_call(
            functools.partial(_gather_kernel, rows=rows_per_step, scale=scale,
                              num_rows=v),
            out_shape=jax.ShapeDtypeStruct((m_pad, d), table.dtype),
            grid_spec=pltpu.PrefetchScalarGridSpec(
                num_scalar_prefetch=1,
                grid=(grid_n,),
                in_specs=[pl.BlockSpec(memory_space=pl.ANY)],  # table stays in HBM
                out_specs=pl.BlockSpec((rows_per_step, d), lambda i, ids: (i, 0)),
                scratch_shapes=[
                    pltpu.VMEM((rows_per_step, d), table.dtype),
                    pltpu.SemaphoreType.DMA((rows_per_step,)),
                ]),
            # Each step is self-contained -> safe to megacore-shard on v7x.
            compiler_params=pltpu.CompilerParams(
                dimension_semantics=("parallel",)),
        )(ids_chunk, table)
        return out[:m] if m_pad != m else out

    if n <= max_tokens_per_call:
        return one_chunk(ids_flat)
    # Chunk so the SMEM-resident id array stays bounded (1-D SMEM pads to
    # next_pow2(4*N) bytes); chunking costs nothing perf-wise.
    chunks = []
    for start in range(0, n, max_tokens_per_call):
        chunks.append(one_chunk(ids_flat[start:start + max_tokens_per_call]))
    return jnp.concatenate(chunks, axis=0)


# ---------------------------------------------------------------------------
# Public wrapper (matches SimpleIDEmbeddings.forward)
# ---------------------------------------------------------------------------
def simple_id_embeddings(x, emb_table, id_pad, *, block_tokens=None,
                         vocab_threshold=None, prepared=None):
    """x: (B, S) int token ids -> (B, S, D) embeddings scaled by sqrt(D).

    `id_pad` is kept for API parity with the torch module; as in
    nn.Embedding.forward, pad tokens simply select the (zeroed) row `id_pad`.
    Out-of-range ids: the one-hot path returns all-zero rows, the gather path
    clamps to [0, V-1] (PyTorch raises instead).
    `prepared` may be the result of _prepare_onehot_table(emb_table) to avoid
    rebuilding the packed table every call.
    """
    del id_pad  # padding behaviour is encoded in the zeroed table row
    b, s = x.shape
    v, d = emb_table.shape
    scale = float(math.sqrt(d))
    ids_flat = x.reshape(b * s).astype(jnp.int32)

    if vocab_threshold is None:
        # v5e's MXU is ~4.7x slower than v6e -> the O(N*Vp*D) one-hot path
        # loses to the O(N*D) gather at a smaller vocab.
        vocab_threshold = 1024 if "v5" in _device_kind() else 2048

    table_bytes = v * d * jnp.dtype(emb_table.dtype).itemsize
    if v <= vocab_threshold and table_bytes <= (16 << 20):
        out = _onehot_embed(ids_flat, emb_table, scale, block_tokens, prepared)
    else:
        out = _gather_embed(ids_flat, emb_table, scale)
    return out.reshape(b, s, d)


if __name__ == "__main__":
    # Module config (small, deterministic)
    size_vocab = 64
    dim_hidden = 32
    id_pad = 0
    B, S = 2, 8

    key = jax.random.PRNGKey(0)
    k_emb, k_ids = jax.random.split(key)

    # nn.Embedding default init ~ N(0, 1); padding row zeroed (as torch does).
    emb_table = jax.random.normal(k_emb, (size_vocab, dim_hidden), jnp.float32)
    emb_table = emb_table.at[id_pad].set(0.0)

    # Token ids, include a few pad tokens.
    x = jax.random.randint(k_ids, (B, S), 0, size_vocab, jnp.int32)
    x = x.at[0, 0].set(id_pad).at[1, 3].set(id_pad)

    # Pure-JAX reference
    ref = jnp.take(emb_table, x, axis=0) * math.sqrt(dim_hidden)

    # Small-vocab one-hot MXU path, with the packed table prepared once
    # (per-table caching of the prep, as the perf review requested).
    prepared = _prepare_onehot_table(emb_table)
    out = jax.block_until_ready(
        simple_id_embeddings(x, emb_table, id_pad, prepared=prepared))
    assert out.shape == (B, S, dim_hidden)
    assert jnp.allclose(out, ref, atol=1e-5, rtol=1e-5)
    # padding rows must be exactly zero
    assert jnp.all(out[0, 0] == 0.0) and jnp.all(out[1, 3] == 0.0)

    # Also exercise the large-vocab batched manual-DMA gather path.
    out_g = jax.block_until_ready(
        simple_id_embeddings(x, emb_table, id_pad, vocab_threshold=0))
    assert out_g.shape == (B, S, dim_hidden)
    assert jnp.allclose(out_g, ref, atol=1e-5, rtol=1e-5)
    assert jnp.all(out_g[0, 0] == 0.0) and jnp.all(out_g[1, 3] == 0.0)

    print("KERNEL_OK")
</pallas_src>

<mosaic_0001>
module attributes {stable_mosaic.version = 11 : i64} {
  func.func @_onehot_kernel(%arg0: i32, %arg1: memref<4x4xi32, #tpu.memory_space<vmem>>, %arg2: memref<512x128xf32, #tpu.memory_space<vmem>>, %arg3: memref<4x128xf32, #tpu.memory_space<vmem>>) attributes {dimension_semantics = [#tpu.dimension_semantics<parallel>], iteration_bounds = array<i64: 1>, scalar_prefetch = 0 : i64, scratch_operands = 0 : i64, tpu.core_type = #tpu.core_type<tc>, window_params = [{transform_indices = @transform_0, window_bounds = array<i64: 4, 4>}, {pipeline_mode = #tpu.pipeline_mode<synchronous>, transform_indices = @transform_1, window_bounds = array<i64: 512, 128>}, {transform_indices = @transform_2, window_bounds = array<i64: 4, 128>}]} {
    %c0 = arith.constant 0 : index
    %c0_0 = arith.constant 0 : index
    %0 = vector.load %arg1[%c0, %c0_0] : memref<4x4xi32, #tpu.memory_space<vmem>>, vector<4x4xi32>
    %1 = tpu.iota {dimensions = array<i32: 1>} : vector<4x128xi32>
    %2 = vector.extract_strided_slice %0 {offsets = [0, 0], sizes = [4, 1], strides = [1, 1]} : vector<4x4xi32> to vector<4x1xi32>
    %3 = vector.broadcast %2 : vector<4x1xi32> to vector<4x128xi32>
    %4 = arith.cmpi eq, %3, %1 : vector<4x128xi32>
    %5 = arith.extui %4 : vector<4x128xi1> to vector<4x128xi32>
    %6 = arith.sitofp %5 : vector<4x128xi32> to vector<4x128xf32>
    %7 = vector.extract_strided_slice %0 {offsets = [0, 1], sizes = [4, 1], strides = [1, 1]} : vector<4x4xi32> to vector<4x1xi32>
    %8 = vector.broadcast %7 : vector<4x1xi32> to vector<4x128xi32>
    %9 = arith.cmpi eq, %8, %1 : vector<4x128xi32>
    %10 = arith.extui %9 : vector<4x128xi1> to vector<4x128xi32>
    %11 = arith.sitofp %10 : vector<4x128xi32> to vector<4x128xf32>
    %12 = vector.extract_strided_slice %0 {offsets = [0, 2], sizes = [4, 1], strides = [1, 1]} : vector<4x4xi32> to vector<4x1xi32>
    %13 = vector.broadcast %12 : vector<4x1xi32> to vector<4x128xi32>
    %14 = arith.cmpi eq, %13, %1 : vector<4x128xi32>
    %15 = arith.extui %14 : vector<4x128xi1> to vector<4x128xi32>
    %16 = arith.sitofp %15 : vector<4x128xi32> to vector<4x128xf32>
    %17 = vector.extract_strided_slice %0 {offsets = [0, 3], sizes = [4, 1], strides = [1, 1]} : vector<4x4xi32> to vector<4x1xi32>
    %18 = vector.broadcast %17 : vector<4x1xi32> to vector<4x128xi32>
    %19 = arith.cmpi eq, %18, %1 : vector<4x128xi32>
    %20 = arith.extui %19 : vector<4x128xi1> to vector<4x128xi32>
    %21 = arith.sitofp %20 : vector<4x128xi32> to vector<4x128xf32>
    %22 = tpu.concatenate %6, %11, %16, %21 in 1 : vector<4x128xf32>, vector<4x128xf32>, vector<4x128xf32>, vector<4x128xf32> -> vector<4x512xf32>
    %c0_1 = arith.constant 0 : index
    %c0_2 = arith.constant 0 : index
    %23 = vector.load %arg2[%c0_1, %c0_2] : memref<512x128xf32, #tpu.memory_space<vmem>>, vector<512x128xf32>
    %cst = arith.constant dense<0.000000e+00> : vector<4x128xf32>
    %24 = tpu.matmul %22, %23, %cst {dimension_numbers = #tpu.dot_dimension_numbers<[1], [0], [0], [1], [0, 0, 1, 1], [], []>} : vector<4x512xf32>, vector<512x128xf32>, vector<4x128xf32> -> vector<4x128xf32>
    %cst_3 = arith.constant 5.65685415 : f32
    %25 = vector.broadcast %cst_3 : f32 to vector<4x128xf32>
    %26 = arith.mulf %24, %25 : vector<4x128xf32>
    %c0_4 = arith.constant 0 : index
    %c0_5 = arith.constant 0 : index
    %27 = vector.load %arg3[%c0_4, %c0_5] : memref<4x128xf32, #tpu.memory_space<vmem>>, vector<4x128xf32>
    tpu.vector_store %arg3[%c0_4, %c0_5], %26 {strides = array<i32>} : memref<4x128xf32, #tpu.memory_space<vmem>>, vector<4x128xf32>,
    return
  }
  func.func @transform_0(%arg0: i32) -> (i32, i32) {
    %c0_i32 = arith.constant 0 : i32
    %c0_i32_0 = arith.constant 0 : i32
    return %arg0, %c0_i32 : i32, i32
  }
  func.func @transform_1(%arg0: i32) -> (i32, i32) {
    %c0_i32 = arith.constant 0 : i32
    %c0_i32_0 = arith.constant 0 : i32
    %c0_i32_1 = arith.constant 0 : i32
    return %c0_i32, %c0_i32_0 : i32, i32
  }
  func.func @transform_2(%arg0: i32) -> (i32, i32) {
    %c0_i32 = arith.constant 0 : i32
    %c0_i32_0 = arith.constant 0 : i32
    return %arg0, %c0_i32 : i32, i32
  }
}

</mosaic_0001>

<llo_original>
// kernel: tpu_custom_call.1
$region0: #{tpu_custom_call.1}
  #allocation0 [shape = 'u32[]', space=smem, size = 0x4, offset = 0x4, fixed_abs, tag = 'smem constant byte address 0x4 - core index']
  #allocation1 [shape = 'u32[144,128]{1,0:T(1,128)}', space=vmem, size = 0x12000, scoped, tag = 'internal scratch']
  %s0 = inlined_call_operand.hbm [shape: s32[4,4], index: 0, kind: input, shape index: {}]
  %s1 = inlined_call_operand.hbm [shape: f32[512,128], index: 1, kind: input, shape index: {}]
  %s2 = inlined_call_operand.hbm [shape: f32[4,128], index: 2, kind: output, shape index: {}]
  %s3 = sld [smem:[#allocation0]]
  $region26: #{tpu_custom_call.1} parent=0
    _
  %s5 = ssub.s32 1, %s3
  %s6 = scalar_select 0, %s5, %s3
  $region1: #{tpu_custom_call.1} parent=0
    #allocation2 [shape = 'u8[2048]{0}', space=vmem, size = 0x800, scoped, tag = 'input window, operand 0, single buffered']
    #allocation3 [shape = 's32[1]{0}', space=sflag, size = 0x4, scoped, tag = 'scoped memory for tpu_custom_call.1']
    #allocation4 [shape = 's32[1]{0}', space=sflag, size = 0x4, scoped, tag = 'scoped memory for tpu_custom_call.1']
    #allocation5 [shape = 'u8[262144]{0}', space=vmem, size = 0x40000, scoped, tag = 'input window, operand 1, single buffered']
    #allocation6 [shape = 's32[1]{0}', space=sflag, size = 0x4, scoped, tag = 'scoped memory for tpu_custom_call.1']
    #allocation7 [shape = 'u8[2048]{0}', space=vmem, size = 0x800, scoped, tag = 'output window, operand 0, single buffered']
    %7 = vsyncpa [#allocation3], 0
    %8 = vsyncpa [#allocation6], 0
    %9 = vsyncpa [#allocation4], 0
    // Predicated region
    $region2: #{tpu_custom_call.1} parent=1 // pred_check
      _
    $region3: #{tpu_custom_call.1} parent=1 // pred_check_branch
      %11 = sbr.rel (0) target = $region5
    $region4: #{tpu_custom_call.1} parent=1 // pred_region
      %s13 = ssub.s32 64, 64
      %14 = vsyncadd [#allocation3], %s13
      %s16 = sshll.u32 [#allocation2], 4
      %s17 = int_to_ptr.vmem [resolvable:$true] %s16
      %19 = dma.hbm_to_vmem [thread:$0]  %s0, 64, %s17, [#allocation3]
    $region5: #{tpu_custom_call.1} parent=1 // pred_fallthru
      _
    // Predicated region
    $region6: #{tpu_custom_call.1} parent=1 // pred_check
      _
    $region7: #{tpu_custom_call.1} parent=1 // pred_check_branch
      %21 = sbr.rel (0) target = $region9
    $region8: #{tpu_custom_call.1} parent=1 // pred_region
      %s23 = ssub.s32 8192, 8192
      %24 = vsyncadd [#allocation6], %s23
      %s25 = sshll.u32 [#allocation5], 4
      %s26 = int_to_ptr.vmem [resolvable:$true] %s25
      %31 = dma.hbm_to_vmem [thread:$0]  %s1, 8192, %s26, [#allocation6], 128, 128, 8
    $region9: #{tpu_custom_call.1} parent=1 // pred_fallthru
      _
    // Predicated region
    $region10: #{tpu_custom_call.1} parent=1 // pred_check
      _
    $region11: #{tpu_custom_call.1} parent=1 // pred_check_branch
      %33 = sbr.rel (0) target = $region13
    $region12: #{tpu_custom_call.1} parent=1 // pred_region
      %34 = dma.done [#allocation3], 64
    $region13: #{tpu_custom_call.1} parent=1 // pred_fallthru
      _
    // Predicated region
    $region14: #{tpu_custom_call.1} parent=1 // pred_check
      _
    $region15: #{tpu_custom_call.1} parent=1 // pred_check_branch
      %36 = sbr.rel (0) target = $region17
    $region16: #{tpu_custom_call.1} parent=1 // pred_region
      %37 = dma.done [#allocation6], 8192
    $region17: #{tpu_custom_call.1} parent=1 // pred_fallthru
      _
    %v38 = vld [vmem:[#allocation2] sm:$0xf]
    %v39 = vlaneseq
    %v40 = vand.u32 %v39, 127
    %41 = vset.pattern.permute.xlu0 0
    %42 = vperm.xlu0 %41, %v38
    %v43 = vpop.permute.xlu0 %42
    %vm44 = vcmp.eq.s32.totalorder %v43, %v40
    %v45 = vsel %vm44, 1, 0
    %v46 = vcvt.s32.f32 %v45
    %47 = vset.pattern.permute.xlu0 1
    %48 = vperm.xlu0 %47, %v38
    %v49 = vpop.permute.xlu0 %48
    %vm50 = vcmp.eq.s32.totalorder %v49, %v40
    %v51 = vsel %vm50, 1, 0
    %v52 = vcvt.s32.f32 %v51
    %53 = vset.pattern.permute.xlu0 2
    %54 = vperm.xlu0 %53, %v38
    %v55 = vpop.permute.xlu0 %54
    %vm56 = vcmp.eq.s32.totalorder %v55, %v40
    %v57 = vsel %vm56, 1, 0
    %v58 = vcvt.s32.f32 %v57
    %59 = vset.pattern.permute.xlu0 3
    %60 = vperm.xlu0 %59, %v38
    %v61 = vpop.permute.xlu0 %60
    %vm62 = vcmp.eq.s32.totalorder %v61, %v40
    %v63 = vsel %vm62, 1, 0
    %v64 = vcvt.s32.f32 %v63
    %v65 = vld [vmem:[#allocation5] sm:$0xff]
    %v66 = vld [vmem:[#allocation5 + $0x8] sm:$0xff]
    %v67 = vld [vmem:[#allocation5 + $0x10] sm:$0xff]
    %v68 = vld [vmem:[#allocation5 + $0x18] sm:$0xff]
    %v69 = vld [vmem:[#allocation5 + $0x20] sm:$0xff]
    %v70 = vld [vmem:[#allocation5 + $0x28] sm:$0xff]
    %v71 = vld [vmem:[#allocation5 + $0x30] sm:$0xff]
    %v72 = vld [vmem:[#allocation5 + $0x38] sm:$0xff]
    %v73 = vld [vmem:[#allocation5 + $0x40] sm:$0xff]
    %v74 = vld [vmem:[#allocation5 + $0x48] sm:$0xff]
    %v75 = vld [vmem:[#allocation5 + $0x50] sm:$0xff]
    %v76 = vld [vmem:[#allocation5 + $0x58] sm:$0xff]
    %v77 = vld [vmem:[#allocation5 + $0x60] sm:$0xff]
    %v78 = vld [vmem:[#allocation5 + $0x68] sm:$0xff]
    %v79 = vld [vmem:[#allocation5 + $0x70] sm:$0xff]
    %v80 = vld [vmem:[#allocation5 + $0x78] sm:$0xff]
    %v81 = vld [vmem:[#allocation5 + $0x80] sm:$0xff]
    %v82 = vld [vmem:[#allocation5 + $0x88] sm:$0xff]
    %v83 = vld [vmem:[#allocation5 + $0x90] sm:$0xff]
    %v84 = vld [vmem:[#allocation5 + $0x98] sm:$0xff]
    %v85 = vld [vmem:[#allocation5 + $0xa0] sm:$0xff]
    %v86 = vld [vmem:[#allocation5 + $0xa8] sm:$0xff]
    %v87 = vld [vmem:[#allocation5 + $0xb0] sm:$0xff]
    %v88 = vld [vmem:[#allocation5 + $0xb8] sm:$0xff]
    %v89 = vld [vmem:[#allocation5 + $0xc0] sm:$0xff]
    %v90 = vld [vmem:[#allocation5 + $0xc8] sm:$0xff]
    %v91 = vld [vmem:[#allocation5 + $0xd0] sm:$0xff]
    %v92 = vld [vmem:[#allocation5 + $0xd8] sm:$0xff]
    %v93 = vld [vmem:[#allocation5 + $0xe0] sm:$0xff]
    %v94 = vld [vmem:[#allocation5 + $0xe8] sm:$0xff]
    %v95 = vld [vmem:[#allocation5 + $0xf0] sm:$0xff]
    %v96 = vld [vmem:[#allocation5 + $0xf8] sm:$0xff]
    %v97 = vld [vmem:[#allocation5 + $0x100] sm:$0xff]
    %v98 = vld [vmem:[#allocation5 + $0x108] sm:$0xff]
    %v99 = vld [vmem:[#allocation5 + $0x110] sm:$0xff]
    %v100 = vld [vmem:[#allocation5 + $0x118] sm:$0xff]
    %v101 = vld [vmem:[#allocation5 + $0x120] sm:$0xff]
    %v102 = vld [vmem:[#allocation5 + $0x128] sm:$0xff]
    %v103 = vld [vmem:[#allocation5 + $0x130] sm:$0xff]
    %v104 = vld [vmem:[#allocation5 + $0x138] sm:$0xff]
    %v105 = vld [vmem:[#allocation5 + $0x140] sm:$0xff]
    %v106 = vld [vmem:[#allocation5 + $0x148] sm:$0xff]
    %v107 = vld [vmem:[#allocation5 + $0x150] sm:$0xff]
    %v108 = vld [vmem:[#allocation5 + $0x158] sm:$0xff]
    %v109 = vld [vmem:[#allocation5 + $0x160] sm:$0xff]
    %v110 = vld [vmem:[#allocation5 + $0x168] sm:$0xff]
    %v111 = vld [vmem:[#allocation5 + $0x170] sm:$0xff]
    %v112 = vld [vmem:[#allocation5 + $0x178] sm:$0xff]
    %v113 = vld [vmem:[#allocation5 + $0x180] sm:$0xff]
    %v114 = vld [vmem:[#allocation5 + $0x188] sm:$0xff]
    %v115 = vld [vmem:[#allocation5 + $0x190] sm:$0xff]
    %v116 = vld [vmem:[#allocation5 + $0x198] sm:$0xff]
    %v117 = vld [vmem:[#allocation5 + $0x1a0] sm:$0xff]
    %v118 = vld [vmem:[#allocation5 + $0x1a8] sm:$0xff]
    %v119 = vld [vmem:[#allocation5 + $0x1b0] sm:$0xff]
    %v120 = vld [vmem:[#allocation5 + $0x1b8] sm:$0xff]
    %v121 = vld [vmem:[#allocation5 + $0x1c0] sm:$0xff]
    %v122 = vld [vmem:[#allocation5 + $0x1c8] sm:$0xff]
    %v123 = vld [vmem:[#allocation5 + $0x1d0] sm:$0xff]
    %v124 = vld [vmem:[#allocation5 + $0x1d8] sm:$0xff]
    %v125 = vld [vmem:[#allocation5 + $0x1e0] sm:$0xff]
    %v126 = vld [vmem:[#allocation5 + $0x1e8] sm:$0xff]
    %v127 = vld [vmem:[#allocation5 + $0x1f0] sm:$0xff]
    %v128 = vld [vmem:[#allocation5 + $0x1f8] sm:$0xff]
    %129 = vmatprep.subr.mxu0 0.0
    %130 = vmatpush1.msra.mxu0 %v65
    %131 = vmatprep.subr.mxu0 0.0
    %132 = vmatpush1.msra.mxu0 %v66
    %133 = vmatprep.subr.mxu0 0.0
    %134 = vmatpush1.msra.mxu0 %v67
    %135 = vmatprep.subr.mxu0 0.0
    %136 = vmatpush1.msra.mxu0 %v68
    %137 = vmatprep.subr.mxu0 0.0
    %138 = vmatpush1.msra.mxu0 %v69
    %139 = vmatprep.subr.mxu0 0.0
    %140 = vmatpush1.msra.mxu0 %v70
    %141 = vmatprep.subr.mxu0 0.0
    %142 = vmatpush1.msra.mxu0 %v71
    %143 = vmatprep.subr.mxu0 0.0
    %144 = vmatpush1.msra.mxu0 %v72
    %145 = vmatprep.subr.mxu0 0.0
    %146 = vmatpush1.msra.mxu0 %v73
    %147 = vmatprep.subr.mxu0 0.0
    %148 = vmatpush1.msra.mxu0 %v74
    %149 = vmatprep.subr.mxu0 0.0
    %150 = vmatpush1.msra.mxu0 %v75
    %151 = vmatprep.subr.mxu0 0.0
    %152 = vmatpush1.msra.mxu0 %v76
    %153 = vmatprep.subr.mxu0 0.0
    %154 = vmatpush1.msra.mxu0 %v77
    %155 = vmatprep.subr.mxu0 0.0
    %156 = vmatpush1.msra.mxu0 %v78
    %157 = vmatprep.subr.mxu0 0.0
    %158 = vmatpush1.msra.mxu0 %v79
    %159 = vmatprep.subr.mxu0 0.0
    %160 = vmatpush1.msra.mxu0 %v80
    %161 = vmatprep.subr.mxu0 0.0
    %162 = vmatpush1.msra.mxu0 %v81
    %163 = vmatprep.subr.mxu0 0.0
    %164 = vmatpush1.msra.mxu0 %v82
    %165 = vmatprep.subr.mxu0 0.0
    %166 = vmatpush1.msra.mxu0 %v83
    %167 = vmatprep.subr.mxu0 0.0
    %168 = vmatpush1.msra.mxu0 %v84
    %169 = vmatprep.subr.mxu0 0.0
    %170 = vmatpush1.msra.mxu0 %v85
    %171 = vmatprep.subr.mxu0 0.0
    %172 = vmatpush1.msra.mxu0 %v86
    %173 = vmatprep.subr.mxu0 0.0
    %174 = vmatpush1.msra.mxu0 %v87
    %175 = vmatprep.subr.mxu0 0.0
    %176 = vmatpush1.msra.mxu0 %v88
    %177 = vmatprep.subr.mxu0 0.0
    %178 = vmatpush1.msra.mxu0 %v89
    %179 = vmatprep.subr.mxu0 0.0
    %180 = vmatpush1.msra.mxu0 %v90
    %181 = vmatprep.subr.mxu0 0.0
    %182 = vmatpush1.msra.mxu0 %v91
    %183 = vmatprep.subr.mxu0 0.0
    %184 = vmatpush1.msra.mxu0 %v92
    %185 = vmatprep.subr.mxu0 0.0
    %186 = vmatpush1.msra.mxu0 %v93
    %187 = vmatprep.subr.mxu0 0.0
    %188 = vmatpush1.msra.mxu0 %v94
    %189 = vmatprep.subr.mxu0 0.0
    %190 = vmatpush1.msra.mxu0 %v95
    %191 = vmatprep.subr.mxu0 0.0
    %192 = vmatpush1.msra.mxu0 %v96
    %193 = vmatprep.mubr.f32.mxu0 %v52
    %194 = vmatmul.mubr.f32.gmra.mrb[0].mxu0 %v46
    %v195 = vpop.f32.mrb[0].mxu0
    %v196 = vadd.f32 0.0, %v195
    %v197 = vpop.f32.mrb[0].mxu0
    %198 = vdwg.mxu0
    %199 = vmatprep.subr.mxu0 0.0
    %200 = vmatpush1.msra.mxu0 %v97
    %201 = vmatprep.subr.mxu0 0.0
    %202 = vmatpush1.msra.mxu0 %v98
    %203 = vmatprep.subr.mxu0 0.0
    %204 = vmatpush1.msra.mxu0 %v99
    %205 = vmatprep.subr.mxu0 0.0
    %206 = vmatpush1.msra.mxu0 %v100
    %207 = vmatprep.subr.mxu0 0.0
    %208 = vmatpush1.msra.mxu0 %v101
    %209 = vmatprep.subr.mxu0 0.0
    %210 = vmatpush1.msra.mxu0 %v102
    %211 = vmatprep.subr.mxu0 0.0
    %212 = vmatpush1.msra.mxu0 %v103
    %213 = vmatprep.subr.mxu0 0.0
    %214 = vmatpush1.msra.mxu0 %v104
    %215 = vmatprep.subr.mxu0 0.0
    %216 = vmatpush1.msra.mxu0 %v105
    %217 = vmatprep.subr.mxu0 0.0
    %218 = vmatpush1.msra.mxu0 %v106
    %219 = vmatprep.subr.mxu0 0.0
    %220 = vmatpush1.msra.mxu0 %v107
    %221 = vmatprep.subr.mxu0 0.0
    %222 = vmatpush1.msra.mxu0 %v108
    %223 = vmatprep.subr.mxu0 0.0
    %224 = vmatpush1.msra.mxu0 %v109
    %225 = vmatprep.subr.mxu0 0.0
    %226 = vmatpush1.msra.mxu0 %v110
    %227 = vmatprep.subr.mxu0 0.0
    %228 = vmatpush1.msra.mxu0 %v111
    %229 = vmatprep.subr.mxu0 0.0
    %230 = vmatpush1.msra.mxu0 %v112
    %231 = vmatprep.subr.mxu0 0.0
    %232 = vmatpush1.msra.mxu0 %v113
    %233 = vmatprep.subr.mxu0 0.0
    %234 = vmatpush1.msra.mxu0 %v114
    %235 = vmatprep.subr.mxu0 0.0
    %236 = vmatpush1.msra.mxu0 %v115
    %237 = vmatprep.subr.mxu0 0.0
    %238 = vmatpush1.msra.mxu0 %v116
    %239 = vmatprep.subr.mxu0 0.0
    %240 = vmatpush1.msra.mxu0 %v117
    %241 = vmatprep.subr.mxu0 0.0
    %242 = vmatpush1.msra.mxu0 %v118
    %243 = vmatprep.subr.mxu0 0.0
    %244 = vmatpush1.msra.mxu0 %v119
    %245 = vmatprep.subr.mxu0 0.0
    %246 = vmatpush1.msra.mxu0 %v120
    %247 = vmatprep.subr.mxu0 0.0
    %248 = vmatpush1.msra.mxu0 %v121
    %249 = vmatprep.subr.mxu0 0.0
    %250 = vmatpush1.msra.mxu0 %v122
    %251 = vmatprep.subr.mxu0 0.0
    %252 = vmatpush1.msra.mxu0 %v123
    %253 = vmatprep.subr.mxu0 0.0
    %254 = vmatpush1.msra.mxu0 %v124
    %255 = vmatprep.subr.mxu0 0.0
    %256 = vmatpush1.msra.mxu0 %v125
    %257 = vmatprep.subr.mxu0 0.0
    %258 = vmatpush1.msra.mxu0 %v126
    %259 = vmatprep.subr.mxu0 0.0
    %260 = vmatpush1.msra.mxu0 %v127
    %261 = vmatprep.subr.mxu0 0.0
    %262 = vmatpush1.msra.mxu0 %v128
    %263 = vmatprep.mubr.f32.mxu0 %v64
    %264 = vmatmul.mubr.f32.gmra.mrb[0].mxu0 %v58
    %v265 = vpop.f32.mrb[0].mxu0
    %v266 = vadd.f32 %v196, %v265
    %v267 = vpop.f32.mrb[0].mxu0
    %268 = vdwg.mxu0
    %v269 = vmul.f32 %v266, 5.656854
    %270 = vst [vmem:[#allocation7] sm:$0xf] %v269
    // Predicated region
    $region18: #{tpu_custom_call.1} parent=1 // pred_check
      _
    $region19: #{tpu_custom_call.1} parent=1 // pred_check_branch
      %272 = sbr.rel (0) target = $region21
    $region20: #{tpu_custom_call.1} parent=1 // pred_region
      %s274 = ssub.s32 64, 64
      %275 = vsyncadd [#allocation4], %s274
      %s277 = sshll.u32 [#allocation7], 4
      %s278 = int_to_ptr.vmem [resolvable:$true] %s277
      %280 = dma.vmem_to_hbm [thread:$0]  %s278, 64, %s2, [#allocation4]
    $region21: #{tpu_custom_call.1} parent=1 // pred_fallthru
      _
    // Predicated region
    $region22: #{tpu_custom_call.1} parent=1 // pred_check
      _
    $region23: #{tpu_custom_call.1} parent=1 // pred_check_branch
      %282 = sbr.rel (0) target = $region25
    $region24: #{tpu_custom_call.1} parent=1 // pred_region
      %283 = dma.done [#allocation4], 64
    $region25: #{tpu_custom_call.1} parent=1 // pred_fallthru
      _
    %284 = vsyncpa [#allocation3], 1
    %285 = vsyncpa [#allocation6], 1
    %286 = vsyncpa [#allocation4], 1

</llo_original>
